<compile_context>
chip_gen: v5e
topology: v5e:2x2
jax: 0.10.0
libtpu: 0.0.40
codegen_flags: <defaults>
</compile_context>

<pallas_src>
import functools

import jax
import jax.numpy as jnp
from jax import lax
from jax.experimental import pallas as pl
from jax.experimental.pallas import tpu as pltpu


# ----------------------------------------------------------------------------- #
# Packed weight-slab layout (shared by the packer and the kernel).
# Every block's row start is rounded up to a multiple of 8 (sublane aligned).
# ----------------------------------------------------------------------------- #
def _slab_layout(F, H):
    lay = {}
    r = 0

    def add(name, nrows, ncols):
        nonlocal r
        r = ((r + 7) // 8) * 8            # 8-align each block's row start
        lay[name] = (r, r + nrows, ncols)
        r += nrows

    add("w_ed", F, 2 * H)        # [enc_w.T | dec_w.T]                    (F, 2H)
    add("b_ed", 1, 2 * H)        # [enc_b   | dec_b  ]                    (1, 2H)
    add("w_gru", 2 * H, 6 * H)   # block-diag([w_ih.T, w_hh.T])           (2H, 6H)
    add("b_gru", 1, 6 * H)       # [b_ih | b_hh]                          (1, 6H)
    add("w1_cat", H, 2 * H)      # [attn_w1.T | ptr_w1.T]                 (H, 2H)
    add("w2_att", H, H)          # attn_w2.T                              (H, H)
    add("w2_ptr", H, H)          # ptr_w2.T                               (H, H)
    add("v_rows", 2, H)          # row 0: attn_v, row 1: ptr_v            (2, H)
    r = ((r + 7) // 8) * 8
    return lay, r


# ----------------------------------------------------------------------------- #
# Kernel: one grid step == one actor decoding step.
# Carried state (hidden vector + previous pointer one-hot) lives in VMEM scratch.
# ----------------------------------------------------------------------------- #
def actor_rollout_kernel(init_ptr_ref,                 # scalar prefetch (SMEM)
                         w_ref, inter_ref, state_ref, hh0_ref,   # inputs
                         act_ref, logp_ref, hhout_ref,           # outputs
                         hh_sc, sel_sc,                          # VMEM scratch
                         *, F, H, N, lay):
    t = pl.program_id(0)
    dot = lambda a, b: jnp.dot(a, b, preferred_element_type=jnp.float32)

    def w(name):
        rs, re, nc = lay[name]
        return w_ref[rs:re, 0:nc]

    # ---- step-0 init of the carried recurrent state ----------------------- #
    @pl.when(t == 0)
    def _():
        hh_sc[...] = hh0_ref[...]
        row_ids0 = lax.broadcasted_iota(jnp.int32, (N, 1), 0)
        # init_ptr < 0 means "no previous action" -> zero selection -> x0 = 0
        sel_sc[...] = (row_ids0 == init_ptr_ref[0]).astype(jnp.float32)

    h_row = hh_sc[...]                                   # (1, H)
    sel = sel_sc[...]                                    # (N, 1) one-hot (or zeros)

    # ---- Encoder over all intersections + Decoder over x0 ----------------- #
    # Conv1d(k=1) == channel matmul. One MXU pass produces both the encoder
    # states and (via the selection mask) the decoder input row:
    #   dec(x0)^T = sel^T @ (inter^T @ W_ed) + b_dec   (x0 = prev-selected column)
    w_ed = w("w_ed")                                     # (F, 2H)
    b_ed = w("b_ed")                                     # (1, 2H)
    ed_nob = dot(inter_ref[...], w_ed)                   # (N, 2H)
    sh_t = ed_nob[:, 0:H] + b_ed[:, 0:H]                 # (N, H) encoder(inter)^T
    x_nob = jnp.sum(ed_nob * sel, axis=0, keepdims=True)  # (1, 2H)
    x_row = x_nob[:, H:2 * H] + b_ed[:, H:2 * H]         # (1, H) decoder(x0)^T

    # ---- single GRU step (row layout, one block-diagonal MXU pass) --------- #
    xh = jnp.concatenate([x_row, h_row], axis=1)         # (1, 2H)
    g = dot(xh, w("w_gru")) + w("b_gru")                 # (1, 6H)
    r_g = jax.nn.sigmoid(g[:, 0:H] + g[:, 3 * H:4 * H])
    z_g = jax.nn.sigmoid(g[:, H:2 * H] + g[:, 4 * H:5 * H])
    n_g = jnp.tanh(g[:, 2 * H:3 * H] + r_g * g[:, 5 * H:6 * H])
    h_new = (1.0 - z_g) * n_g + z_g * h_row              # (1, H)
    hh_sc[...] = h_new
    hhout_ref[...] = h_new
    # drop_rnn / drop_hh are identity in eval mode (dropout p = 0.0)

    # ---- Attention over encoder states (shared W1 pass feeds the Pointer) -- #
    ue = dot(sh_t, w("w1_cat"))                          # (N, 2H)
    v_rows = w("v_rows")                                 # (2, H)
    h_att = dot(h_new, w("w2_att"))                      # (1, H)
    u_t = jnp.tanh(ue[:, 0:H] + h_att)                   # (N, H)
    # v-dot as VPU multiply + lane reduce (no 1-column MXU pass)
    att_logits = jnp.sum(u_t * v_rows[0:1, :], axis=1, keepdims=True)   # (N, 1)
    am = jnp.max(att_logits, axis=0, keepdims=True)
    ae = jnp.exp(att_logits - am)
    attns = ae / jnp.sum(ae, axis=0, keepdims=True)      # exact normalization
    context = jnp.sum(sh_t * attns, axis=0, keepdims=True)   # (1, H)

    # ---- Pointer scores ---------------------------------------------------- #
    ctx_term = dot(context, w("w2_ptr"))                 # (1, H)
    e_t = jnp.tanh(ue[:, H:2 * H] + ctx_term)            # (N, H)
    scores = jnp.sum(e_t * v_rows[1:2, :], axis=1, keepdims=True)       # (N, 1)

    # ---- masked softmax stats: logits = scores + log(state), robust -------- #
    # NOTE: an all-zero mask yields a (finite) uniform distribution instead of
    # the NaNs the torch log(0) reference would produce.
    state_col = state_ref[0]                             # (N, 1) availability mask
    safe_log = jnp.where(state_col > 0.0,
                         jnp.log(jnp.maximum(state_col, 1e-30)),
                         jnp.float32(-1e30))
    logits = scores + safe_log                           # (N, 1)
    m = jnp.max(logits, axis=0, keepdims=True)           # (1, 1)
    lse_shift = jnp.sum(jnp.exp(logits - m), axis=0, keepdims=True)
    logp = -jnp.log(lse_shift)                           # (1,1) = log(max softmax prob), exact

    # ---- greedy (eval-mode) selection head, fully in-kernel ---------------- #
    is_max = logits == m                                 # argmax(probs) == argmax(logits)
    row_ids = lax.broadcasted_iota(jnp.int32, (N, 1), 0).astype(jnp.float32)
    ptr11 = jnp.min(jnp.where(is_max, row_ids, jnp.float32(N)),
                    axis=0, keepdims=True)               # (1,1) first-max index
    sel_sc[...] = (row_ids == ptr11).astype(jnp.float32)  # carried to step t+1
    lane_ids = lax.broadcasted_iota(jnp.int32, (1, N), 1).astype(jnp.float32)
    action_row = jnp.where(lane_ids == ptr11, 0, 1).astype(jnp.int32)   # (1, N)

    act_ref[...] = action_row.reshape(1, 1, N)
    logp_ref[...] = logp.reshape(1, 1, 1)


# ----------------------------------------------------------------------------- #
# Wrappers
# ----------------------------------------------------------------------------- #
def _build_rollout_call(T, N, F, H, R, W, lay):
    kernel = functools.partial(actor_rollout_kernel, F=F, H=H, N=N, lay=lay)
    return pl.pallas_call(
        kernel,
        out_shape=(jax.ShapeDtypeStruct((T, 1, N), jnp.int32),    # actions
                   jax.ShapeDtypeStruct((T, 1, 1), jnp.float32),  # log-probs
                   jax.ShapeDtypeStruct((1, H), jnp.float32)),    # final hidden
        grid_spec=pltpu.PrefetchScalarGridSpec(
            num_scalar_prefetch=1,           # init_ptr (int32 scalar in SMEM)
            grid=(T,),
            in_specs=[
                pl.BlockSpec((R, W), lambda t, ip: (0, 0)),        # weight slab (resident)
                pl.BlockSpec((N, F), lambda t, ip: (0, 0)),        # intersections^T (resident)
                pl.BlockSpec((1, N, 1), lambda t, ip: (t, 0, 0)),  # per-step state mask
                pl.BlockSpec((1, H), lambda t, ip: (0, 0)),        # initial hidden (resident)
            ],
            out_specs=(
                pl.BlockSpec((1, 1, N), lambda t, ip: (t, 0, 0)),
                pl.BlockSpec((1, 1, 1), lambda t, ip: (t, 0, 0)),
                pl.BlockSpec((1, H), lambda t, ip: (0, 0)),
            ),
            scratch_shapes=[pltpu.VMEM((1, H), jnp.float32),   # carried hidden
                            pltpu.VMEM((N, 1), jnp.float32)],  # carried pointer one-hot
        ),
        compiler_params=pltpu.CompilerParams(
            dimension_semantics=("arbitrary",)),   # recurrent T axis
    )


@jax.jit
def _rollout_core(init_ptr, w_slab, inter_t, states3, hh0):
    T, N, _ = states3.shape
    F = inter_t.shape[1]
    H = hh0.shape[1]
    R, W = w_slab.shape
    lay, _ = _slab_layout(F, H)
    call = _build_rollout_call(T, N, F, H, R, W, lay)
    return call(init_ptr, w_slab, inter_t, states3, hh0)


def actor_rollout(packed, states, intersections, previous_action=None, last_hh=None):
    """Fused T-step rollout (ONE pallas_call, grid=(T,)).

    states: (T, N) or (T, 1, N) availability masks; intersections: (1, F, N).
    Returns (actions (T, N) int32, log-probs (T, 1), final hidden (1, 1, H)).
    """
    B, F_, N_ = intersections.shape
    assert B == 1, "kernel implemented for batch=1 (as in the reference Actor)"
    H_ = packed["H"]

    inter_t = jnp.transpose(intersections[0]).astype(jnp.float32)      # (N, F), once/call
    states3 = jnp.asarray(states, jnp.float32).reshape(-1, N_, 1)      # (T, N, 1), free reshape
    if previous_action is None:
        init_ptr = jnp.full((1,), -1, jnp.int32)
    else:
        init_ptr = jnp.argmin(previous_action.reshape(-1)).reshape(1).astype(jnp.int32)
    hh0 = (jnp.zeros((1, H_), jnp.float32) if last_hh is None
           else jnp.asarray(last_hh, jnp.float32).reshape(1, H_))

    actions, logps, hh_last = _rollout_core(init_ptr, packed["slab"], inter_t, states3, hh0)
    T = states3.shape[0]
    return actions.reshape(T, N_), logps.reshape(T, 1), hh_last.reshape(1, 1, H_)


def actor_forward(packed, state, intersections, previous_action=None, last_hh=None):
    """Single actor step (Actor_Critic.forward actor path): T=1 rollout.

    state: (1, N) mask; intersections: (1, F, N); last_hh: (1, 1, H) or None.
    Returns (action (1, N) int32, rsu_logp (1, 1), current_hh (1, 1, H)).
    """
    N_ = intersections.shape[2]
    actions, logps, hh = actor_rollout(
        packed, jnp.asarray(state, jnp.float32).reshape(1, N_),
        intersections, previous_action, last_hh)
    return actions[0:1, :], logps[0:1, :], hh
    # TODO(synk): training-mode Categorical sampling with rejection loop not
    # implemented (data-dependent sampling; eval/greedy argmax head only).
    # TODO(synk): critic_net of Actor_Critic is an injected module with no
    # architecture in the spec; critic_reward is not produced here.


# ----------------------------------------------------------------------------- #
# Parameter construction / one-time packing
# ----------------------------------------------------------------------------- #
def _glorot(key, shape):
    fan_out, fan_in = shape[0], shape[1]
    limit = (6.0 / (fan_in + fan_out)) ** 0.5
    return jax.random.uniform(key, shape, jnp.float32, -limit, limit)


def make_params(key, state_size, hidden_size):
    F_, H_ = state_size, hidden_size
    ks = jax.random.split(key, 12)
    bnd_f = 1.0 / (F_ ** 0.5)
    bnd_h = 1.0 / (H_ ** 0.5)
    return {
        # Encoder / Decoder Conv1d(k=1): weight (H, F, 1) -> (H, F)
        "enc_w": _glorot(ks[0], (H_, F_)),
        "enc_b": jax.random.uniform(ks[1], (H_, 1), jnp.float32, -bnd_f, bnd_f),
        "dec_w": _glorot(ks[2], (H_, F_)),
        "dec_b": jax.random.uniform(ks[3], (H_, 1), jnp.float32, -bnd_f, bnd_f),
        # GRU(H, H, num_layers=1)
        "w_ih": _glorot(ks[4], (3 * H_, H_)),
        "w_hh": _glorot(ks[5], (3 * H_, H_)),
        "b_ih": jax.random.uniform(ks[6], (3 * H_, 1), jnp.float32, -bnd_h, bnd_h),
        "b_hh": jax.random.uniform(ks[7], (3 * H_, 1), jnp.float32, -bnd_h, bnd_h),
        # Attention params: v (1,1,H) -> (1,H);  W (1,H,2H) split into two (H,H)
        "attn_v": _glorot(ks[8], (1, H_)),
        "attn_w1": _glorot(ks[9], (H_, 2 * H_))[:, :H_],
        "attn_w2": _glorot(ks[9], (H_, 2 * H_))[:, H_:],
        # Pointer params
        "ptr_v": _glorot(ks[10], (1, H_)),
        "ptr_w1": _glorot(ks[11], (H_, 2 * H_))[:, :H_],
        "ptr_w2": _glorot(ks[11], (H_, 2 * H_))[:, H_:],
    }


def pack_actor_params(p):
    """One-time packing of all weights into a single lane-dense, 8-row-aligned slab."""
    H, F = p["enc_w"].shape
    lay, nrows = _slab_layout(F, H)
    R = nrows                                        # already 8-aligned
    W = max(((6 * H + 127) // 128) * 128, 128)       # lane-tile aligned width
    slab = jnp.zeros((R, W), jnp.float32)

    w_gru = jnp.zeros((2 * H, 6 * H), jnp.float32)
    w_gru = w_gru.at[0:H, 0:3 * H].set(p["w_ih"].T.astype(jnp.float32))
    w_gru = w_gru.at[H:2 * H, 3 * H:6 * H].set(p["w_hh"].T.astype(jnp.float32))

    blocks = {
        "w_ed": jnp.concatenate([p["enc_w"].T, p["dec_w"].T], axis=1),
        "b_ed": jnp.concatenate([p["enc_b"].reshape(1, H), p["dec_b"].reshape(1, H)], axis=1),
        "w_gru": w_gru,
        "b_gru": jnp.concatenate([p["b_ih"].reshape(1, 3 * H), p["b_hh"].reshape(1, 3 * H)], axis=1),
        "w1_cat": jnp.concatenate([p["attn_w1"].T, p["ptr_w1"].T], axis=1),
        "w2_att": p["attn_w2"].T,
        "w2_ptr": p["ptr_w2"].T,
        "v_rows": jnp.concatenate([p["attn_v"].reshape(1, H), p["ptr_v"].reshape(1, H)], axis=0),
    }
    for name, blk in blocks.items():
        rs, re, nc = lay[name]
        slab = slab.at[rs:re, 0:nc].set(blk.astype(jnp.float32))

    # NOTE: slab kept f32 for numerical fidelity; since it is VMEM-resident
    # across the whole grid (constant index_map) the DMA is paid once per call,
    # so a bf16 slab gains little here.
    return {"slab": slab, "F": F, "H": H}


# ----------------------------------------------------------------------------- #
if __name__ == "__main__":
    STATE_SIZE, HIDDEN_SIZE, NUM_INTERSECTIONS, T = 4, 32, 16, 8

    key = jax.random.PRNGKey(0)
    kp, kx = jax.random.split(key)
    params = make_params(kp, STATE_SIZE, HIDDEN_SIZE)
    packed = pack_actor_params(params)

    intersections = jax.random.normal(kx, (1, STATE_SIZE, NUM_INTERSECTIONS), jnp.float32)
    state = jnp.ones((1, NUM_INTERSECTIONS), jnp.float32)   # all intersections available

    # --- single-step module semantics (Actor_Critic.forward actor path) ---
    action1, logp1, hh1 = actor_forward(packed, state, intersections, None, None)
    action2, logp2, hh2 = actor_forward(packed, state, intersections, action1, hh1)
    jax.block_until_ready((action1, logp1, hh1, action2, logp2, hh2))
    assert action1.shape == (1, NUM_INTERSECTIONS) and action1.dtype == jnp.int32
    assert logp1.shape == (1, 1) and hh1.shape == (1, 1, HIDDEN_SIZE)
    assert int(jnp.sum(action1)) == NUM_INTERSECTIONS - 1      # exactly one selected
    assert bool(jnp.isfinite(logp1).all()) and bool(jnp.isfinite(logp2).all())

    # --- fused multi-step rollout: ONE pallas_call with grid=(T,) ---
    states_seq = jnp.ones((T, NUM_INTERSECTIONS), jnp.float32)
    actionsR, logpsR, hhR = actor_rollout(packed, states_seq, intersections, None, None)
    jax.block_until_ready((actionsR, logpsR, hhR))
    assert actionsR.shape == (T, NUM_INTERSECTIONS) and actionsR.dtype == jnp.int32
    assert logpsR.shape == (T, 1) and hhR.shape == (1, 1, HIDDEN_SIZE)
    assert bool(jnp.isfinite(logpsR).all())

    # consistency: the first two rollout steps reproduce the two chained
    # single-step calls (hidden state + pointer carried in-kernel).
    assert bool(jnp.array_equal(actionsR[0], action1[0]))
    assert bool(jnp.array_equal(actionsR[1], action2[0]))
    assert bool(jnp.allclose(logpsR[0, 0], logp1[0, 0], atol=1e-5))
    assert bool(jnp.allclose(logpsR[1, 0], logp2[0, 0], atol=1e-5))

    # final hidden of a T=2 rollout must match the chained single-step hidden
    actions2R, logps2R, hh2R = actor_rollout(
        packed, jnp.ones((2, NUM_INTERSECTIONS), jnp.float32), intersections, None, None)
    jax.block_until_ready((actions2R, logps2R, hh2R))
    assert bool(jnp.allclose(hh2R, hh2, atol=1e-5))

    print("KERNEL_OK")
</pallas_src>

<mosaic_0001>
module attributes {stable_mosaic.version = 11 : i64} {
  func.func @actor_rollout_kernel(%arg0: i32, %arg1: memref<1xi32, #tpu.memory_space<smem>>, %arg2: memref<192x256xf32, #tpu.memory_space<vmem>>, %arg3: memref<16x4xf32, #tpu.memory_space<vmem>>, %arg4: memref<1x16x1xf32, #tpu.memory_space<vmem>>, %arg5: memref<1x32xf32, #tpu.memory_space<vmem>>, %arg6: memref<1x1x16xi32, #tpu.memory_space<vmem>>, %arg7: memref<1x1x1xf32, #tpu.memory_space<vmem>>, %arg8: memref<1x32xf32, #tpu.memory_space<vmem>>, %arg9: memref<1x32xf32, #tpu.memory_space<vmem>>, %arg10: memref<16x1xf32, #tpu.memory_space<vmem>>) attributes {dimension_semantics = [#tpu.dimension_semantics<arbitrary>], iteration_bounds = array<i64: 1>, scalar_prefetch = 1 : i64, scratch_operands = 2 : i64, tpu.core_type = #tpu.core_type<tc>, window_params = [{pipeline_mode = #tpu.pipeline_mode<synchronous>, transform_indices = @transform_0, window_bounds = array<i64: 192, 256>}, {pipeline_mode = #tpu.pipeline_mode<synchronous>, transform_indices = @transform_1, window_bounds = array<i64: 16, 4>}, {transform_indices = @transform_2, window_bounds = array<i64: 1, 16, 1>}, {pipeline_mode = #tpu.pipeline_mode<synchronous>, transform_indices = @transform_3, window_bounds = array<i64: 1, 32>}, {transform_indices = @transform_4, window_bounds = array<i64: 1, 1, 16>}, {transform_indices = @transform_5, window_bounds = array<i64: 1, 1, 1>}, {pipeline_mode = #tpu.pipeline_mode<synchronous>, transform_indices = @transform_6, window_bounds = array<i64: 1, 32>}]} {
    %c0_i32 = arith.constant 0 : i32
    %0 = arith.cmpi eq, %arg0, %c0_i32 : i32
    %1 = arith.extui %0 : i1 to i32
    %c0_i32_0 = arith.constant 0 : i32
    %2 = arith.cmpi ne, %1, %c0_i32_0 : i32
    scf.if %2 {
      %c0_52 = arith.constant 0 : index
      %c0_53 = arith.constant 0 : index
      %135 = vector.load %arg5[%c0_52, %c0_53] : memref<1x32xf32, #tpu.memory_space<vmem>>, vector<1x32xf32>
      %c0_54 = arith.constant 0 : index
      %c0_55 = arith.constant 0 : index
      %136 = vector.load %arg9[%c0_54, %c0_55] : memref<1x32xf32, #tpu.memory_space<vmem>>, vector<1x32xf32>
      tpu.vector_store %arg9[%c0_54, %c0_55], %135 {strides = array<i32>} : memref<1x32xf32, #tpu.memory_space<vmem>>, vector<1x32xf32>,
      %137 = tpu.iota {dimensions = array<i32: 0>} : vector<16x1xi32>
      %c0_56 = arith.constant 0 : index
      %138 = memref.load %arg1[%c0_56] : memref<1xi32, #tpu.memory_space<smem>>
      %139 = vector.broadcast %138 : i32 to vector<16x1xi32>
      %140 = arith.cmpi eq, %137, %139 : vector<16x1xi32>
      %141 = arith.extui %140 : vector<16x1xi1> to vector<16x1xi32>
      %142 = arith.sitofp %141 : vector<16x1xi32> to vector<16x1xf32>
      %c0_57 = arith.constant 0 : index
      %c0_58 = arith.constant 0 : index
      %143 = vector.load %arg10[%c0_57, %c0_58] : memref<16x1xf32, #tpu.memory_space<vmem>>, vector<16x1xf32>
      tpu.vector_store %arg10[%c0_57, %c0_58], %142 {strides = array<i32>} : memref<16x1xf32, #tpu.memory_space<vmem>>, vector<16x1xf32>,
    } else {
    }
    %c0 = arith.constant 0 : index
    %c0_1 = arith.constant 0 : index
    %3 = vector.load %arg9[%c0, %c0_1] : memref<1x32xf32, #tpu.memory_space<vmem>>, vector<1x32xf32>
    %c0_2 = arith.constant 0 : index
    %c0_3 = arith.constant 0 : index
    %4 = vector.load %arg10[%c0_2, %c0_3] : memref<16x1xf32, #tpu.memory_space<vmem>>, vector<16x1xf32>
    %c0_4 = arith.constant 0 : index
    %c0_5 = arith.constant 0 : index
    %5 = vector.load %arg2[%c0_4, %c0_5] : memref<192x256xf32, #tpu.memory_space<vmem>>, vector<4x64xf32>
    %c8 = arith.constant 8 : index
    %c0_6 = arith.constant 0 : index
    %6 = vector.load %arg2[%c8, %c0_6] : memref<192x256xf32, #tpu.memory_space<vmem>>, vector<1x64xf32>
    %c0_7 = arith.constant 0 : index
    %c0_8 = arith.constant 0 : index
    %7 = vector.load %arg3[%c0_7, %c0_8] : memref<16x4xf32, #tpu.memory_space<vmem>>, vector<16x4xf32>
    %cst = arith.constant dense<0.000000e+00> : vector<16x64xf32>
    %8 = tpu.matmul %7, %5, %cst {dimension_numbers = #tpu.dot_dimension_numbers<[1], [0], [0], [1], [0, 0, 1, 1], [], []>} : vector<16x4xf32>, vector<4x64xf32>, vector<16x64xf32> -> vector<16x64xf32>
    %9 = vector.extract_strided_slice %8 {offsets = [0, 0], sizes = [16, 32], strides = [1, 1]} : vector<16x64xf32> to vector<16x32xf32>
    %10 = vector.extract_strided_slice %6 {offsets = [0, 0], sizes = [1, 32], strides = [1, 1]} : vector<1x64xf32> to vector<1x32xf32>
    %11 = vector.broadcast %10 : vector<1x32xf32> to vector<16x32xf32>
    %12 = arith.addf %9, %11 : vector<16x32xf32>
    %13 = vector.broadcast %4 : vector<16x1xf32> to vector<16x64xf32>
    %14 = arith.mulf %8, %13 : vector<16x64xf32>
    %cst_9 = arith.constant dense<0.000000e+00> : vector<64xf32>
    %15 = vector.multi_reduction <add>, %14, %cst_9 [0] : vector<16x64xf32> to vector<64xf32>
    %16 = vector.shape_cast %15 : vector<64xf32> to vector<1x64xf32>
    %17 = vector.extract_strided_slice %16 {offsets = [0, 32], sizes = [1, 32], strides = [1, 1]} : vector<1x64xf32> to vector<1x32xf32>
    %18 = vector.extract_strided_slice %6 {offsets = [0, 32], sizes = [1, 32], strides = [1, 1]} : vector<1x64xf32> to vector<1x32xf32>
    %19 = arith.addf %17, %18 : vector<1x32xf32>
    %20 = tpu.concatenate %19, %3 in 1 : vector<1x32xf32>, vector<1x32xf32> -> vector<1x64xf32>
    %c16 = arith.constant 16 : index
    %c0_10 = arith.constant 0 : index
    %21 = vector.load %arg2[%c16, %c0_10] : memref<192x256xf32, #tpu.memory_space<vmem>>, vector<64x192xf32>
    %cst_11 = arith.constant dense<0.000000e+00> : vector<1x192xf32>
    %22 = tpu.matmul %20, %21, %cst_11 {dimension_numbers = #tpu.dot_dimension_numbers<[1], [0], [0], [1], [0, 0, 1, 1], [], []>} : vector<1x64xf32>, vector<64x192xf32>, vector<1x192xf32> -> vector<1x192xf32>
    %c80 = arith.constant 80 : index
    %c0_12 = arith.constant 0 : index
    %23 = vector.load %arg2[%c80, %c0_12] : memref<192x256xf32, #tpu.memory_space<vmem>>, vector<1x192xf32>
    %24 = arith.addf %22, %23 : vector<1x192xf32>
    %25 = vector.extract_strided_slice %24 {offsets = [0, 0], sizes = [1, 32], strides = [1, 1]} : vector<1x192xf32> to vector<1x32xf32>
    %26 = vector.extract_strided_slice %24 {offsets = [0, 96], sizes = [1, 32], strides = [1, 1]} : vector<1x192xf32> to vector<1x32xf32>
    %27 = arith.addf %25, %26 : vector<1x32xf32>
    %28 = arith.negf %27 : vector<1x32xf32>
    %29 = math.exp %28 : vector<1x32xf32>
    %cst_13 = arith.constant 1.000000e+00 : f32
    %30 = vector.broadcast %cst_13 : f32 to vector<1x32xf32>
    %31 = arith.addf %30, %29 : vector<1x32xf32>
    %32 = arith.divf %30, %31 : vector<1x32xf32>
    %33 = vector.extract_strided_slice %24 {offsets = [0, 32], sizes = [1, 32], strides = [1, 1]} : vector<1x192xf32> to vector<1x32xf32>
    %34 = vector.extract_strided_slice %24 {offsets = [0, 128], sizes = [1, 32], strides = [1, 1]} : vector<1x192xf32> to vector<1x32xf32>
    %35 = arith.addf %33, %34 : vector<1x32xf32>
    %36 = arith.negf %35 : vector<1x32xf32>
    %37 = math.exp %36 : vector<1x32xf32>
    %cst_14 = arith.constant 1.000000e+00 : f32
    %38 = vector.broadcast %cst_14 : f32 to vector<1x32xf32>
    %39 = arith.addf %38, %37 : vector<1x32xf32>
    %40 = arith.divf %38, %39 : vector<1x32xf32>
    %41 = vector.extract_strided_slice %24 {offsets = [0, 64], sizes = [1, 32], strides = [1, 1]} : vector<1x192xf32> to vector<1x32xf32>
    %42 = vector.extract_strided_slice %24 {offsets = [0, 160], sizes = [1, 32], strides = [1, 1]} : vector<1x192xf32> to vector<1x32xf32>
    %43 = arith.mulf %32, %42 : vector<1x32xf32>
    %44 = arith.addf %41, %43 : vector<1x32xf32>
    %45 = math.tanh %44 : vector<1x32xf32>
    %cst_15 = arith.constant 1.000000e+00 : f32
    %46 = vector.broadcast %cst_15 : f32 to vector<1x32xf32>
    %47 = arith.subf %46, %40 : vector<1x32xf32>
    %48 = arith.mulf %47, %45 : vector<1x32xf32>
    %49 = arith.mulf %40, %3 : vector<1x32xf32>
    %50 = arith.addf %48, %49 : vector<1x32xf32>
    %c0_16 = arith.constant 0 : index
    %c0_17 = arith.constant 0 : index
    %51 = vector.load %arg9[%c0_16, %c0_17] : memref<1x32xf32, #tpu.memory_space<vmem>>, vector<1x32xf32>
    tpu.vector_store %arg9[%c0_16, %c0_17], %50 {strides = array<i32>} : memref<1x32xf32, #tpu.memory_space<vmem>>, vector<1x32xf32>,
    %c0_18 = arith.constant 0 : index
    %c0_19 = arith.constant 0 : index
    %52 = vector.load %arg8[%c0_18, %c0_19] : memref<1x32xf32, #tpu.memory_space<vmem>>, vector<1x32xf32>
    tpu.vector_store %arg8[%c0_18, %c0_19], %50 {strides = array<i32>} : memref<1x32xf32, #tpu.memory_space<vmem>>, vector<1x32xf32>,
    %c88 = arith.constant 88 : index
    %c0_20 = arith.constant 0 : index
    %53 = vector.load %arg2[%c88, %c0_20] : memref<192x256xf32, #tpu.memory_space<vmem>>, vector<32x64xf32>
    %cst_21 = arith.constant dense<0.000000e+00> : vector<16x64xf32>
    %54 = tpu.matmul %12, %53, %cst_21 {dimension_numbers = #tpu.dot_dimension_numbers<[1], [0], [0], [1], [0, 0, 1, 1], [], []>} : vector<16x32xf32>, vector<32x64xf32>, vector<16x64xf32> -> vector<16x64xf32>
    %c184 = arith.constant 184 : index
    %c0_22 = arith.constant 0 : index
    %55 = vector.load %arg2[%c184, %c0_22] : memref<192x256xf32, #tpu.memory_space<vmem>>, vector<2x32xf32>
    %c120 = arith.constant 120 : index
    %c0_23 = arith.constant 0 : index
    %56 = vector.load %arg2[%c120, %c0_23] : memref<192x256xf32, #tpu.memory_space<vmem>>, vector<32x32xf32>
    %cst_24 = arith.constant dense<0.000000e+00> : vector<1x32xf32>
    %57 = tpu.matmul %50, %56, %cst_24 {dimension_numbers = #tpu.dot_dimension_numbers<[1], [0], [0], [1], [0, 0, 1, 1], [], []>} : vector<1x32xf32>, vector<32x32xf32>, vector<1x32xf32> -> vector<1x32xf32>
    %58 = vector.extract_strided_slice %54 {offsets = [0, 0], sizes = [16, 32], strides = [1, 1]} : vector<16x64xf32> to vector<16x32xf32>
    %59 = vector.broadcast %57 : vector<1x32xf32> to vector<16x32xf32>
    %60 = arith.addf %58, %59 : vector<16x32xf32>
    %61 = math.tanh %60 : vector<16x32xf32>
    %62 = vector.extract_strided_slice %55 {offsets = [0, 0], sizes = [1, 32], strides = [1, 1]} : vector<2x32xf32> to vector<1x32xf32>
    %63 = vector.broadcast %62 : vector<1x32xf32> to vector<16x32xf32>
    %64 = arith.mulf %61, %63 : vector<16x32xf32>
    %cst_25 = arith.constant dense<0.000000e+00> : vector<16xf32>
    %65 = vector.multi_reduction <add>, %64, %cst_25 [1] : vector<16x32xf32> to vector<16xf32>
    %66 = vector.shape_cast %65 : vector<16xf32> to vector<16x1xf32>
    %cst_26 = arith.constant dense<0xFF800000> : vector<1xf32>
    %67 = vector.multi_reduction <maximumf>, %66, %cst_26 [0] : vector<16x1xf32> to vector<1xf32>
    %68 = vector.shape_cast %67 : vector<1xf32> to vector<1x1xf32>
    %69 = vector.broadcast %68 : vector<1x1xf32> to vector<16x1xf32>
    %70 = arith.subf %66, %69 : vector<16x1xf32>
    %71 = math.exp %70 : vector<16x1xf32>
    %cst_27 = arith.constant dense<0.000000e+00> : vector<1xf32>
    %72 = vector.multi_reduction <add>, %71, %cst_27 [0] : vector<16x1xf32> to vector<1xf32>
    %73 = vector.shape_cast %72 : vector<1xf32> to vector<1x1xf32>
    %74 = vector.broadcast %73 : vector<1x1xf32> to vector<16x1xf32>
    %75 = arith.divf %71, %74 : vector<16x1xf32>
    %76 = vector.broadcast %75 : vector<16x1xf32> to vector<16x32xf32>
    %77 = arith.mulf %12, %76 : vector<16x32xf32>
    %cst_28 = arith.constant dense<0.000000e+00> : vector<32xf32>
    %78 = vector.multi_reduction <add>, %77, %cst_28 [0] : vector<16x32xf32> to vector<32xf32>
    %79 = vector.shape_cast %78 : vector<32xf32> to vector<1x32xf32>
    %c152 = arith.constant 152 : index
    %c0_29 = arith.constant 0 : index
    %80 = vector.load %arg2[%c152, %c0_29] : memref<192x256xf32, #tpu.memory_space<vmem>>, vector<32x32xf32>
    %cst_30 = arith.constant dense<0.000000e+00> : vector<1x32xf32>
    %81 = tpu.matmul %79, %80, %cst_30 {dimension_numbers = #tpu.dot_dimension_numbers<[1], [0], [0], [1], [0, 0, 1, 1], [], []>} : vector<1x32xf32>, vector<32x32xf32>, vector<1x32xf32> -> vector<1x32xf32>
    %82 = vector.extract_strided_slice %54 {offsets = [0, 32], sizes = [16, 32], strides = [1, 1]} : vector<16x64xf32> to vector<16x32xf32>
    %83 = vector.broadcast %81 : vector<1x32xf32> to vector<16x32xf32>
    %84 = arith.addf %82, %83 : vector<16x32xf32>
    %85 = math.tanh %84 : vector<16x32xf32>
    %86 = vector.extract_strided_slice %55 {offsets = [1, 0], sizes = [1, 32], strides = [1, 1]} : vector<2x32xf32> to vector<1x32xf32>
    %87 = vector.broadcast %86 : vector<1x32xf32> to vector<16x32xf32>
    %88 = arith.mulf %85, %87 : vector<16x32xf32>
    %cst_31 = arith.constant dense<0.000000e+00> : vector<16xf32>
    %89 = vector.multi_reduction <add>, %88, %cst_31 [1] : vector<16x32xf32> to vector<16xf32>
    %90 = vector.shape_cast %89 : vector<16xf32> to vector<16x1xf32>
    %c0_32 = arith.constant 0 : index
    %c0_33 = arith.constant 0 : index
    %c0_34 = arith.constant 0 : index
    %91 = vector.load %arg4[%c0_32, %c0_33, %c0_34] : memref<1x16x1xf32, #tpu.memory_space<vmem>>, vector<1x16x1xf32>
    %92 = vector.shape_cast %91 : vector<1x16x1xf32> to vector<16x1xf32>
    %cst_35 = arith.constant 0.000000e+00 : f32
    %93 = vector.broadcast %cst_35 : f32 to vector<16x1xf32>
    %94 = arith.cmpf ogt, %92, %93 : vector<16x1xf32>
    %cst_36 = arith.constant 1.000000e-30 : f32
    %95 = vector.broadcast %cst_36 : f32 to vector<16x1xf32>
    %96 = arith.maximumf %92, %95 : vector<16x1xf32>
    %97 = math.log %96 : vector<16x1xf32>
    %cst_37 = arith.constant -1.000000e+30 : f32
    %98 = vector.broadcast %cst_37 : f32 to vector<16x1xf32>
    %99 = arith.select %94, %97, %98 : vector<16x1xi1>, vector<16x1xf32>
    %100 = arith.addf %90, %99 : vector<16x1xf32>
    %cst_38 = arith.constant dense<0xFF800000> : vector<1xf32>
    %101 = vector.multi_reduction <maximumf>, %100, %cst_38 [0] : vector<16x1xf32> to vector<1xf32>
    %102 = vector.shape_cast %101 : vector<1xf32> to vector<1x1xf32>
    %103 = vector.broadcast %102 : vector<1x1xf32> to vector<16x1xf32>
    %104 = arith.subf %100, %103 : vector<16x1xf32>
    %105 = math.exp %104 : vector<16x1xf32>
    %cst_39 = arith.constant dense<0.000000e+00> : vector<1xf32>
    %106 = vector.multi_reduction <add>, %105, %cst_39 [0] : vector<16x1xf32> to vector<1xf32>
    %107 = vector.shape_cast %106 : vector<1xf32> to vector<1x1xf32>
    %108 = math.log %107 : vector<1x1xf32>
    %cst_40 = arith.constant 0.000000e+00 : f32
    %109 = vector.broadcast %cst_40 : f32 to vector<1x1xf32>
    %110 = arith.subf %109, %108 : vector<1x1xf32>
    %111 = vector.broadcast %102 : vector<1x1xf32> to vector<16x1xf32>
    %112 = arith.cmpf oeq, %100, %111 : vector<16x1xf32>
    %113 = tpu.iota {dimensions = array<i32: 0>} : vector<16x1xi32>
    %114 = arith.sitofp %113 : vector<16x1xi32> to vector<16x1xf32>
    %cst_41 = arith.constant 1.600000e+01 : f32
    %115 = vector.broadcast %cst_41 : f32 to vector<16x1xf32>
    %116 = arith.select %112, %114, %115 : vector<16x1xi1>, vector<16x1xf32>
    %cst_42 = arith.constant dense<0x7F800000> : vector<1xf32>
    %117 = vector.multi_reduction <minimumf>, %116, %cst_42 [0] : vector<16x1xf32> to vector<1xf32>
    %118 = vector.shape_cast %117 : vector<1xf32> to vector<1x1xf32>
    %119 = vector.broadcast %118 : vector<1x1xf32> to vector<16x1xf32>
    %120 = arith.cmpf oeq, %114, %119 : vector<16x1xf32>
    %121 = arith.extui %120 : vector<16x1xi1> to vector<16x1xi32>
    %122 = arith.sitofp %121 : vector<16x1xi32> to vector<16x1xf32>
    %c0_43 = arith.constant 0 : index
    %c0_44 = arith.constant 0 : index
    %123 = vector.load %arg10[%c0_43, %c0_44] : memref<16x1xf32, #tpu.memory_space<vmem>>, vector<16x1xf32>
    tpu.vector_store %arg10[%c0_43, %c0_44], %122 {strides = array<i32>} : memref<16x1xf32, #tpu.memory_space<vmem>>, vector<16x1xf32>,
    %124 = tpu.iota {dimensions = array<i32: 1>} : vector<1x16xi32>
    %125 = arith.sitofp %124 : vector<1x16xi32> to vector<1x16xf32>
    %126 = vector.broadcast %118 : vector<1x1xf32> to vector<1x16xf32>
    %127 = arith.cmpf oeq, %125, %126 : vector<1x16xf32>
    %c0_i32_45 = arith.constant 0 : i32
    %c1_i32 = arith.constant 1 : i32
    %128 = vector.broadcast %c0_i32_45 : i32 to vector<1x16xi32>
    %129 = vector.broadcast %c1_i32 : i32 to vector<1x16xi32>
    %130 = arith.select %127, %128, %129 : vector<1x16xi1>, vector<1x16xi32>
    %131 = vector.shape_cast %130 : vector<1x16xi32> to vector<1x1x16xi32>
    %c0_46 = arith.constant 0 : index
    %c0_47 = arith.constant 0 : index
    %c0_48 = arith.constant 0 : index
    %132 = vector.load %arg6[%c0_46, %c0_47, %c0_48] : memref<1x1x16xi32, #tpu.memory_space<vmem>>, vector<1x1x16xi32>
    tpu.vector_store %arg6[%c0_46, %c0_47, %c0_48], %131 {strides = array<i32>} : memref<1x1x16xi32, #tpu.memory_space<vmem>>, vector<1x1x16xi32>,
    %133 = vector.shape_cast %110 : vector<1x1xf32> to vector<1x1x1xf32>
    %c0_49 = arith.constant 0 : index
    %c0_50 = arith.constant 0 : index
    %c0_51 = arith.constant 0 : index
    %134 = vector.load %arg7[%c0_49, %c0_50, %c0_51] : memref<1x1x1xf32, #tpu.memory_space<vmem>>, vector<1x1x1xf32>
    tpu.vector_store %arg7[%c0_49, %c0_50, %c0_51], %133 {strides = array<i32>} : memref<1x1x1xf32, #tpu.memory_space<vmem>>, vector<1x1x1xf32>,
    return
  }
  func.func @transform_0(%arg0: i32, %arg1: memref<1xi32, #tpu.memory_space<smem>>) -> (i32, i32) {
    %c0_i32 = arith.constant 0 : i32
    %c0_i32_0 = arith.constant 0 : i32
    %c0_i32_1 = arith.constant 0 : i32
    return %c0_i32, %c0_i32_0 : i32, i32
  }
  func.func @transform_1(%arg0: i32, %arg1: memref<1xi32, #tpu.memory_space<smem>>) -> (i32, i32) {
    %c0_i32 = arith.constant 0 : i32
    %c0_i32_0 = arith.constant 0 : i32
    %c0_i32_1 = arith.constant 0 : i32
    return %c0_i32, %c0_i32_0 : i32, i32
  }
  func.func @transform_2(%arg0: i32, %arg1: memref<1xi32, #tpu.memory_space<smem>>) -> (i32, i32, i32) {
    %c0_i32 = arith.constant 0 : i32
    %c0_i32_0 = arith.constant 0 : i32
    %c0_i32_1 = arith.constant 0 : i32
    return %arg0, %c0_i32, %c0_i32_0 : i32, i32, i32
  }
  func.func @transform_3(%arg0: i32, %arg1: memref<1xi32, #tpu.memory_space<smem>>) -> (i32, i32) {
    %c0_i32 = arith.constant 0 : i32
    %c0_i32_0 = arith.constant 0 : i32
    %c0_i32_1 = arith.constant 0 : i32
    return %c0_i32, %c0_i32_0 : i32, i32
  }
  func.func @transform_4(%arg0: i32, %arg1: memref<1xi32, #tpu.memory_space<smem>>) -> (i32, i32, i32) {
    %c0_i32 = arith.constant 0 : i32
    %c0_i32_0 = arith.constant 0 : i32
    %c0_i32_1 = arith.constant 0 : i32
    return %arg0, %c0_i32, %c0_i32_0 : i32, i32, i32
  }
  func.func @transform_5(%arg0: i32, %arg1: memref<1xi32, #tpu.memory_space<smem>>) -> (i32, i32, i32) {
    %c0_i32 = arith.constant 0 : i32
    %c0_i32_0 = arith.constant 0 : i32
    %c0_i32_1 = arith.constant 0 : i32
    return %arg0, %c0_i32, %c0_i32_0 : i32, i32, i32
  }
  func.func @transform_6(%arg0: i32, %arg1: memref<1xi32, #tpu.memory_space<smem>>) -> (i32, i32) {
    %c0_i32 = arith.constant 0 : i32
    %c0_i32_0 = arith.constant 0 : i32
    %c0_i32_1 = arith.constant 0 : i32
    return %c0_i32, %c0_i32_0 : i32, i32
  }
}

</mosaic_0001>

<llo_original>
// kernel: _rollout_core.1
$region0: #{_rollout_core.1}
  #allocation0 [shape = 'u32[]', space=smem, size = 0x4, offset = 0x4, fixed_abs, tag = 'smem constant byte address 0x4 - core index']
  #allocation1 [shape = 'u32[72,128]{1,0:T(1,128)}', space=vmem, size = 0x9000, scoped, tag = 'internal scratch']
  #allocation2 [shape = 'f32[1,32]{1,0:T(1,128)}', space=vmem, size = 0x200, scoped, tag = 'scratch operand']
  #allocation3 [shape = 'f32[16,1]{1,0:T(8,128)}', space=vmem, size = 0x2000, scoped, tag = 'scratch operand']
  #allocation4 [shape = 's32[1]{0}', space=sflag, size = 0x4, scoped, tag = 'scoped memory for _rollout_core.1']
  #allocation5 [shape = 's32[1]{0:T(128)S(6)}', space=smem, size = 0x200, scoped, tag = 'prefetched SMEM operand 0']
  %s0 = inlined_call_operand.<no memory space> [shape: s32[1], index: 0, kind: input, shape index: {}]
  %s1 = inlined_call_operand.hbm [shape: f32[192,256], index: 1, kind: input, shape index: {}]
  %s2 = inlined_call_operand.vmem [shape: f32[16,4], index: 2, kind: input, shape index: {}]
  %s3 = inlined_call_operand.vmem [shape: f32[1,16,1], index: 3, kind: input, shape index: {}]
  %s4 = inlined_call_operand.vmem [shape: f32[1,32], index: 4, kind: input, shape index: {}]
  %s5 = inlined_call_operand.hbm [shape: s32[1,1,16], index: 5, kind: output, shape index: {0}]
  %s6 = inlined_call_operand.hbm [shape: f32[1,1,1], index: 6, kind: output, shape index: {1}]
  %s7 = inlined_call_operand.hbm [shape: f32[1,32], index: 7, kind: output, shape index: {2}]
  %8 = xla_tuple %s5, %s6, %s7
  %s9 = sld [smem:[#allocation0]]
  $region50: #{_rollout_core.1} parent=0
    _
  %s11 = ssub.s32 1, %s9
  %s12 = scalar_select 0, %s11, %s9
  %13 = sst [smem:[#allocation5]] %s0
  $region1: #{_rollout_core.1} parent=0
    #allocation6 [shape = 'u8[196608]{0}', space=vmem, size = 0x30000, scoped, tag = 'input window, operand 1, single buffered']
    #allocation7 [shape = 's32[1]{0}', space=sflag, size = 0x4, scoped, tag = 'scoped memory for _rollout_core.1']
    #allocation8 [shape = 's32[1]{0}', space=sflag, size = 0x4, scoped, tag = 'scoped memory for _rollout_core.1']
    #allocation9 [shape = 'u8[512]{0}', space=vmem, size = 0x400, scoped, tag = 'output window, operand 0, single buffered']
    #allocation10 [shape = 'u8[512]{0}', space=vmem, size = 0x400, scoped, tag = 'output window, operand 1, single buffered']
    #allocation11 [shape = 's32[1]{0}', space=sflag, size = 0x4, scoped, tag = 'scoped memory for _rollout_core.1']
    #allocation12 [shape = 'u8[512]{0}', space=vmem, size = 0x400, scoped, tag = 'output window, operand 2, single buffered']
    %14 = vsyncpa [#allocation7], 0
    %15 = vsyncpa [#allocation8], 0
    %16 = vsyncpa [#allocation11], 0
    // Predicated region
    $region2: #{_rollout_core.1} parent=1 // pred_check
      _
    $region3: #{_rollout_core.1} parent=1 // pred_check_branch
      %18 = sbr.rel (0) target = $region5
    $region4: #{_rollout_core.1} parent=1 // pred_region
      %20 = vsyncadd [#allocation7], 0
      %s21 = sshll.u32 %s1, 4
      %s22 = int_to_ptr.hbm [resolvable:$true] %s21
      %s23 = sshll.u32 [#allocation6], 4
      %s24 = int_to_ptr.vmem [resolvable:$true] %s23
      %29 = dma.hbm_to_vmem [thread:$0]  %s22, 6144, %s24, [#allocation7], 256, 256, 16
    $region5: #{_rollout_core.1} parent=1 // pred_fallthru
      _
    // Predicated region
    $region6: #{_rollout_core.1} parent=1 // pred_check
      _
    $region7: #{_rollout_core.1} parent=1 // pred_check_branch
      %31 = sbr.rel (0) target = $region9
    $region8: #{_rollout_core.1} parent=1 // pred_region
      _
    $region9: #{_rollout_core.1} parent=1 // pred_fallthru
      _
    // Predicated region
    $region10: #{_rollout_core.1} parent=1 // pred_check
      _
    $region11: #{_rollout_core.1} parent=1 // pred_check_branch
      %33 = sbr.rel (0) target = $region13
    $region12: #{_rollout_core.1} parent=1 // pred_region
      _
    $region13: #{_rollout_core.1} parent=1 // pred_fallthru
      _
    // Predicated region
    $region14: #{_rollout_core.1} parent=1 // pred_check
      _
    $region15: #{_rollout_core.1} parent=1 // pred_check_branch
      %35 = sbr.rel (0) target = $region17
    $region16: #{_rollout_core.1} parent=1 // pred_region
      _
    $region17: #{_rollout_core.1} parent=1 // pred_fallthru
      _
    // Predicated region
    $region18: #{_rollout_core.1} parent=1 // pred_check
      _
    $region19: #{_rollout_core.1} parent=1 // pred_check_branch
      %37 = sbr.rel (0) target = $region21
    $region20: #{_rollout_core.1} parent=1 // pred_region
      %39 = dma.done [#allocation7], 6144
    $region21: #{_rollout_core.1} parent=1 // pred_fallthru
      _
    %p40 = scmp.eq.s32.totalorder 0, 0
    // Predicated region
    $region22: #{_rollout_core.1} parent=1 // pred_check
      %p41 = pneg %p40
    $region23: #{_rollout_core.1} parent=1 // pred_check_branch
      %43 = sbr.rel (%p41) target = $region25
    $region24: #{_rollout_core.1} parent=1 // pred_region
      %v44 = vld [vmem:[%s4] sm:$0x1]
      %vm45 = vcmask 253952
      %46 = vst.msk [vmem:[#allocation2] sm:$0x1] %vm45, %v44
      %v47 = vlaneseq
      %v48 = vshrl.u32 %v47, 7
      %v49 = vadd.s32 %v48, 8
      %s50 = sld [smem:[#allocation5]]
      %v51 = vstv %s50
      %vm52 = vcmp.eq.s32.totalorder %v48, %v51
      %vm53 = vcmp.eq.s32.totalorder %v49, %v51
      %v54 = vsel %vm52, 1, 0
      %v55 = vsel %vm53, 1, 0
      %v56 = vcvt.s32.f32 %v54
      %v57 = vcvt.s32.f32 %v55
      %vm58 = vcmask 7168
      %59 = vst.msk [vmem:[#allocation3] sm:$0xff] %vm58, %v56
      %60 = vst.msk [vmem:[#allocation3 + $0x8] sm:$0xff] %vm58, %v57
    $region25: #{_rollout_core.1} parent=1 // pred_fallthru
      _
    %v61 = vld [vmem:[#allocation2] sm:$0x1]
    %v62 = vld [vmem:[#allocation3] sm:$0xff]
    %v63 = vld [vmem:[#allocation3 + $0x8] sm:$0xff]
    %v64 = vld [vmem:[#allocation6] sm:$0xf]
    %v65 = vld [vmem:[#allocation6 + $0x10] ss:$0 sm:$0xff]
    %v66 = vld [vmem:[%s2] sm:$0xff]
    %v67 = vld [vmem:[%s2 + $0x8] sm:$0xff]
    %vm68 = vcmask 31744
    %v70 = vsel %vm68, %v66, 0
    %v73 = vsel %vm68, %v67, 0
    %vm75 = vcmask 1043456
    %v77 = vsel %vm75, %v64, 0
    %79 = vmatpush.msra.mxu0 0.0
    %80 = vmatpush.msra.mxu0 0.0
    %81 = vmatpush.msra.mxu0 0.0
    %82 = vmatpush.msra.mxu0 0.0
    %83 = vmatpush.msra.mxu0 0.0
    %84 = vmatpush.msra.mxu0 0.0
    %85 = vmatpush.msra.mxu0 0.0
    %86 = vmatpush.msra.mxu0 0.0
    %87 = vmatpush.msra.mxu0 0.0
    %88 = vmatpush.msra.mxu0 0.0
    %89 = vmatpush.msra.mxu0 0.0
    %90 = vmatpush.msra.mxu0 0.0
    %91 = vmatpush.msra.mxu0 0.0
    %92 = vmatpush.msra.mxu0 0.0
    %93 = vmatpush.msra.mxu0 0.0
    %94 = vmatpush.msra.mxu0 %v77
    %95 = vmatmul.f32.gmra.mxu0 %v70
    %v96 = vpop.f32.mrf.mxu0
    %v97 = vadd.f32 0.0, %v96
    %98 = vmatmul.f32.gmra.mxu0 %v73
    %v99 = vpop.f32.mrf.mxu0
    %v100 = vadd.f32 0.0, %v99
    %101 = vdwg.mxu0
    %v102 = vadd.f32 %v97, %v65
    %v103 = vadd.f32 %v100, %v65
    %105 = vset.pattern.permute.xlu0 0
    %106 = vperm.xlu0 %105, %v62
    %v107 = vpop.permute.xlu0 %106
    %110 = vset.pattern.permute.xlu0 0
    %111 = vperm.xlu0 %110, %v63
    %v112 = vpop.permute.xlu0 %111
    %v114 = vmul.f32 %v97, %v107
    %v115 = vmul.f32 %v100, %v112
    %vm116 = vcmask 523264
    %v117 = vsel %vm116, %v114, 0.0
    %v118 = vsel %vm116, %v115, 0.0
    %v119 = vadd.f32 %v117, %v118
    %v120 = vrot.slane %v119, 4
    %v121 = vadd.f32 %v119, %v120
    %v122 = vrot.slane %v121, 2
    %v123 = vadd.f32 %v121, %v122
    %v124 = vrot.slane %v123, 1
    %v125 = vadd.f32 %v123, %v124
    %v126 = vadd.f32 %v125, %v65
    %128 = vrot.lane.b32.xlu0 %v126, 96
    %v129 = vpop.permute.xlu0 %128
    %v132 = vperm.slane %v61, 0
    %133 = vrot.lane.b32.xlu0 %v132, 32
    %v134 = vpop.permute.xlu0 %133
    %vm136 = vcmask 261120
    %v137 = vsel %vm136, %v129, %v134
    %v138 = vld [vmem:[#allocation6 + $0x20] sm:$0xff]
    %v139 = vld [vmem:[#allocation6 + $0x28] sm:$0xff]
    %v140 = vld [vmem:[#allocation6 + $0x30] sm:$0xff]
    %v141 = vld [vmem:[#allocation6 + $0x38] sm:$0xff]
    %v142 = vld [vmem:[#allocation6 + $0x40] sm:$0xff]
    %v143 = vld [vmem:[#allocation6 + $0x48] sm:$0xff]
    %v144 = vld [vmem:[#allocation6 + $0x50] sm:$0xff]
    %v145 = vld [vmem:[#allocation6 + $0x58] sm:$0xff]
    %v146 = vld [vmem:[#allocation6 + $0x60] sm:$0xff]
    %v147 = vld [vmem:[#allocation6 + $0x68] sm:$0xff]
    %v148 = vld [vmem:[#allocation6 + $0x70] sm:$0xff]
    %v149 = vld [vmem:[#allocation6 + $0x78] sm:$0xff]
    %v150 = vld [vmem:[#allocation6 + $0x80] sm:$0xff]
    %v151 = vld [vmem:[#allocation6 + $0x88] sm:$0xff]
    %v152 = vld [vmem:[#allocation6 + $0x90] sm:$0xff]
    %v153 = vld [vmem:[#allocation6 + $0x98] sm:$0xff]
    %s154 = scalar_lea.vmem [#allocation6], 160
    %v155 = vld [vmem:[%s154] ss:$8 sm:$0x3]
    %v157 = vperm.slane %v155, 0
    %v158 = vperm.slane %v155, 1
    %v162 = vsel %vm116, %v137, 0
    %164 = vmatpush.msra.mxu0 0.0
    %165 = vmatpush.msra.mxu0 0.0
    %166 = vmatpush.msra.mxu0 0.0
    %167 = vmatpush.msra.mxu0 0.0
    %168 = vmatpush.msra.mxu0 0.0
    %169 = vmatpush.msra.mxu0 0.0
    %170 = vmatpush.msra.mxu0 0.0
    %171 = vmatpush.msra.mxu0 0.0
    %172 = vmatpush.msra.mxu0 %v152
    %173 = vmatpush.msra.mxu0 %v150
    %174 = vmatpush.msra.mxu0 %v148
    %175 = vmatpush.msra.mxu0 %v146
    %176 = vmatpush.msra.mxu0 %v144
    %177 = vmatpush.msra.mxu0 %v142
    %178 = vmatpush.msra.mxu0 %v140
    %179 = vmatpush.msra.mxu0 %v138
    %180 = vmatmul.f32.gmra.mxu0 %v162
    %v181 = vpop.f32.mrf.mxu0
    %v182 = vadd.f32 %v157, %v181
    %183 = vdwg.mxu0
    %184 = vmatpush.msra.mxu0 0.0
    %185 = vmatpush.msra.mxu0 0.0
    %186 = vmatpush.msra.mxu0 0.0
    %187 = vmatpush.msra.mxu0 0.0
    %188 = vmatpush.msra.mxu0 0.0
    %189 = vmatpush.msra.mxu0 0.0
    %190 = vmatpush.msra.mxu0 0.0
    %191 = vmatpush.msra.mxu0 0.0
    %192 = vmatpush.msra.mxu0 %v153
    %193 = vmatpush.msra.mxu0 %v151
    %194 = vmatpush.msra.mxu0 %v149
    %195 = vmatpush.msra.mxu0 %v147
    %196 = vmatpush.msra.mxu0 %v145
    %197 = vmatpush.msra.mxu0 %v143
    %198 = vmatpush.msra.mxu0 %v141
    %199 = vmatpush.msra.mxu0 %v139
    %200 = vmatmul.f32.gmra.mxu0 %v162
    %v201 = vpop.f32.mrf.mxu0
    %v202 = vadd.f32 %v158, %v201
    %203 = vdwg.mxu0
    %205 = vrot.lane.b32.xlu0 %v182, 32
    %v206 = vpop.permute.xlu0 %205
    %v208 = vadd.f32 %v182, %v206
    %v209 = vxor.u32 %v208, 2147483648
    %v210 = vmul.f32 %v209, 1.442695
    %v211 = vpow.pop %v210
    %v212 = vadd.f32 %v211, 1.0
    %v213 = vrcp.pop %v212
    %v214 = vmul.f32 %v212, %v213
    %v215 = vsub.f32 1.0, %v214
    %v216 = vmul.f32 %v213, %v215
    %v217 = vadd.f32 %v213, %v216
    %vm218 = vweird.f32 %v212
    %vm219 = vweird.f32 %v213
    %vm220 = vmor %vm218, %vm219
    %v221 = vsel %vm220, %v213, %v217
    %v222 = vand.u32 2147483647, %v212
    %vm223 = vcmp.eq.f32.partialorder %v222, 8.507059e+37
    %v224 = vand.u32 %v212, 2147483648
    %v225 = vor.u32 1.1754944e-38, %v224
    %v226 = vsel %vm223, %v225, %v221
    %v227 = vmul.f32 1.0, %v226
    %229 = vrot.lane.b32.xlu0 %v202, 32
    %v230 = vpop.permute.xlu0 %229
    %v232 = vadd.f32 %v182, %v230
    %v233 = vxor.u32 %v232, 2147483648
    %v234 = vmul.f32 %v233, 1.442695
    %v235 = vpow.pop %v234
    %v236 = vadd.f32 %v235, 1.0
    %v237 = vrcp.pop %v236
    %v238 = vmul.f32 %v236, %v237
    %v239 = vsub.f32 1.0, %v238
    %v240 = vmul.f32 %v237, %v239
    %v241 = vadd.f32 %v237, %v240
    %vm242 = vweird.f32 %v236
    %vm243 = vweird.f32 %v237
    %vm244 = vmor %vm242, %vm243
    %v245 = vsel %vm244, %v237, %v241
    %v246 = vand.u32 2147483647, %v236
    %vm247 = vcmp.eq.f32.partialorder %v246, 8.507059e+37
    %v248 = vand.u32 %v236, 2147483648
    %v249 = vor.u32 1.1754944e-38, %v248
    %v250 = vsel %vm247, %v249, %v245
    %v251 = vmul.f32 1.0, %v250
    %252 = vrot.lane.b32.xlu0 %v202, 96
    %v253 = vpop.permute.xlu0 %252
    %v255 = vmul.f32 %v227, %v253
    %257 = vrot.lane.b32.xlu0 %v255, 64
    %v258 = vpop.permute.xlu0 %257
    %v260 = vadd.f32 %v182, %v258
    %v261 = vtanh.pop %v260
    %v262 = vsub.f32 1.0, %v251
    %264 = vrot.lane.b32.xlu0 %v261, 96
    %v265 = vpop.permute.xlu0 %264
    %v267 = vmul.f32 %v262, %v265
    %v268 = vmul.f32 %v251, %v134
    %v269 = vadd.f32 %v267, %v268
    %271 = vrot.lane.b32.xlu0 %v269, 96
    %v272 = vpop.permute.xlu0 %271
    %vm274 = vcmask 253952
    %275 = vst.msk [vmem:[#allocation2] sm:$0x1] %vm274, %v272
    %276 = vst.msk [vmem:[#allocation12] sm:$0x1] %vm274, %v272
    %v277 = vld [vmem:[#allocation6 + $0xb0] sm:$0xff]
    %v278 = vld [vmem:[#allocation6 + $0xc0] sm:$0xff]
    %v279 = vld [vmem:[#allocation6 + $0xd0] sm:$0xff]
    %v280 = vld [vmem:[#allocation6 + $0xe0] sm:$0xff]
    %v282 = vsel %vm136, %v102, 0
    %v285 = vsel %vm136, %v103, 0
    %287 = vmatpush.msra.mxu0 0.0
    %288 = vmatpush.msra.mxu0 0.0
    %289 = vmatpush.msra.mxu0 0.0
    %290 = vmatpush.msra.mxu0 0.0
    %291 = vmatpush.msra.mxu0 0.0
    %292 = vmatpush.msra.mxu0 0.0
    %293 = vmatpush.msra.mxu0 0.0
    %294 = vmatpush.msra.mxu0 0.0
    %295 = vmatpush.msra.mxu0 0.0
    %296 = vmatpush.msra.mxu0 0.0
    %297 = vmatpush.msra.mxu0 0.0
    %298 = vmatpush.msra.mxu0 0.0
    %299 = vmatpush.msra.mxu0 %v280
    %300 = vmatpush.msra.mxu0 %v279
    %301 = vmatpush.msra.mxu0 %v278
    %302 = vmatpush.msra.mxu0 %v277
    %303 = vmatmul.f32.gmra.mxu0 %v282
    %v304 = vpop.f32.mrf.mxu0
    %v305 = vadd.f32 0.0, %v304
    %306 = vmatmul.f32.gmra.mxu0 %v285
    %v307 = vpop.f32.mrf.mxu0
    %v308 = vadd.f32 0.0, %v307
    %309 = vdwg.mxu0
    %v310 = vld [vmem:[#allocation6 + $0x170] sm:$0x3]
    %v311 = vld [vmem:[#allocation6 + $0xf0] sm:$0xff]
    %v312 = vld [vmem:[#allocation6 + $0x100] sm:$0xff]
    %v313 = vld [vmem:[#allocation6 + $0x110] sm:$0xff]
    %v314 = vld [vmem:[#allocation6 + $0x120] sm:$0xff]
    %v315 = vsel %vm136, %v272, 0
    %317 = vmatpush.msra.mxu0 0.0
    %318 = vmatpush.msra.mxu0 0.0
    %319 = vmatpush.msra.mxu0 0.0
    %320 = vmatpush.msra.mxu0 0.0
    %321 = vmatpush.msra.mxu0 0.0
    %322 = vmatpush.msra.mxu0 0.0
    %323 = vmatpush.msra.mxu0 0.0
    %324 = vmatpush.msra.mxu0 0.0
    %325 = vmatpush.msra.mxu0 0.0
    %326 = vmatpush.msra.mxu0 0.0
    %327 = vmatpush.msra.mxu0 0.0
    %328 = vmatpush.msra.mxu0 0.0
    %329 = vmatpush.msra.mxu0 %v314
    %330 = vmatpush.msra.mxu0 %v313
    %331 = vmatpush.msra.mxu0 %v312
    %332 = vmatpush.msra.mxu0 %v311
    %333 = vmatmul.f32.gmra.mxu0 %v315
    %v334 = vpop.f32.mrf.mxu0
    %v335 = vadd.f32 0.0, %v334
    %336 = vdwg.mxu0
    %v337 = vperm.slane %v335, 0
    %v338 = vadd.f32 %v305, %v337
    %v339 = vadd.f32 %v308, %v337
    %v340 = vtanh.pop %v338
    %v341 = vtanh.pop %v339
    %v342 = vperm.slane %v310, 0
    %v343 = vmul.f32 %v340, %v342
    %v344 = vmul.f32 %v341, %v342
    %v345 = vsel %vm136, %v343, 0.0
    %346 = vadd.xlane.f32.xlu0 %v345
    %v347 = vpop.xlane.xlu0 %346
    %v348 = vsel %vm136, %v344, 0.0
    %349 = vadd.xlane.f32.xlu0 %v348
    %v350 = vpop.xlane.xlu0 %349
    %v351 = vmax.f32 %v347, %v350
    %v352 = vrot.slane %v351, 4
    %v353 = vmax.f32 %v351, %v352
    %v354 = vrot.slane %v353, 2
    %v355 = vmax.f32 %v353, %v354
    %v356 = vrot.slane %v355, 1
    %v357 = vmax.f32 %v355, %v356
    %v358 = vsub.f32 %v347, %v357
    %v359 = vsub.f32 %v350, %v357
    %v360 = vmul.f32 %v358, 1.442695
    %v361 = vpow.pop %v360
    %v362 = vmul.f32 %v359, 1.442695
    %v363 = vpow.pop %v362
    %v364 = vadd.f32 %v361, %v363
    %v365 = vrot.slane %v364, 4
    %v366 = vadd.f32 %v364, %v365
    %v367 = vrot.slane %v366, 2
    %v368 = vadd.f32 %v366, %v367
    %v369 = vrot.slane %v368, 1
    %v370 = vadd.f32 %v368, %v369
    %v371 = vrcp.pop %v370
    %v372 = vmul.f32 %v370, %v371
    %v373 = vsub.f32 1.0, %v372
    %v374 = vmul.f32 %v371, %v373
    %v375 = vadd.f32 %v371, %v374
    %vm376 = vweird.f32 %v370
    %vm377 = vweird.f32 %v371
    %vm378 = vmor %vm376, %vm377
    %v379 = vsel %vm378, %v371, %v375
    %v380 = vand.u32 2147483647, %v370
    %vm381 = vcmp.eq.f32.partialorder %v380, 8.507059e+37
    %v382 = vand.u32 %v370, 2147483648
    %v383 = vor.u32 1.1754944e-38, %v382
    %v384 = vsel %vm381, %v383, %v379
    %v385 = vmul.f32 %v361, %v384
    %v386 = vmul.f32 %v363, %v384
    %v387 = vmul.f32 %v102, %v385
    %v388 = vmul.f32 %v103, %v386
    %v389 = vsel %vm136, %v387, 0.0
    %v390 = vsel %vm136, %v388, 0.0
    %v391 = vadd.f32 %v389, %v390
    %v392 = vrot.slane %v391, 4
    %v393 = vadd.f32 %v391, %v392
    %v394 = vrot.slane %v393, 2
    %v395 = vadd.f32 %v393, %v394
    %v396 = vrot.slane %v395, 1
    %v397 = vadd.f32 %v395, %v396
    %v398 = vld [vmem:[#allocation6 + $0x130] sm:$0xff]
    %v399 = vld [vmem:[#allocation6 + $0x140] sm:$0xff]
    %v400 = vld [vmem:[#allocation6 + $0x150] sm:$0xff]
    %v401 = vld [vmem:[#allocation6 + $0x160] sm:$0xff]
    %v403 = vsel %vm136, %v397, 0
    %405 = vmatpush.msra.mxu0 0.0
    %406 = vmatpush.msra.mxu0 0.0
    %407 = vmatpush.msra.mxu0 0.0
    %408 = vmatpush.msra.mxu0 0.0
    %409 = vmatpush.msra.mxu0 0.0
    %410 = vmatpush.msra.mxu0 0.0
    %411 = vmatpush.msra.mxu0 0.0
    %412 = vmatpush.msra.mxu0 0.0
    %413 = vmatpush.msra.mxu0 0.0
    %414 = vmatpush.msra.mxu0 0.0
    %415 = vmatpush.msra.mxu0 0.0
    %416 = vmatpush.msra.mxu0 0.0
    %417 = vmatpush.msra.mxu0 %v401
    %418 = vmatpush.msra.mxu0 %v400
    %419 = vmatpush.msra.mxu0 %v399
    %420 = vmatpush.msra.mxu0 %v398
    %421 = vmatmul.f32.gmra.mxu0 %v403
    %v422 = vpop.f32.mrf.mxu0
    %v423 = vadd.f32 0.0, %v422
    %424 = vdwg.mxu0
    %v425 = vperm.slane %v423, 0
    %427 = vrot.lane.b32.xlu0 %v425, 32
    %v428 = vpop.permute.xlu0 %427
    %v430 = vadd.f32 %v305, %v428
    %v431 = vadd.f32 %v308, %v428
    %v432 = vtanh.pop %v430
    %v433 = vtanh.pop %v431
    %v434 = vperm.slane %v310, 1
    %436 = vrot.lane.b32.xlu0 %v434, 32
    %v437 = vpop.permute.xlu0 %436
    %v439 = vmul.f32 %v432, %v437
    %v440 = vmul.f32 %v433, %v437
    %443 = vrot.lane.b32.xlu0 %v439, 96
    %v444 = vpop.permute.xlu0 %443
    %445 = vrot.lane.b32.xlu0 %v440, 96
    %v446 = vpop.permute.xlu0 %445
    %v449 = vsel %vm136, %v444, 0.0
    %450 = vadd.xlane.f32.xlu0 %v449
    %v451 = vpop.xlane.xlu0 %450
    %v452 = vsel %vm136, %v446, 0.0
    %453 = vadd.xlane.f32.xlu0 %v452
    %v454 = vpop.xlane.xlu0 %453
    %v455 = vld [vmem:[%s3] sm:$0xff]
    %v456 = vld [vmem:[%s3 + $0x8] sm:$0xff]
    %vm457 = vcmp.gt.f32.partialorder %v455, 0.0
    %vm458 = vcmp.gt.f32.partialorder %v456, 0.0
    %v459 = vmax.f32 %v455, 1e-30
    %v460 = vmax.f32 %v456, 1e-30
    %v461 = vlog2.pop %v459
    %v462 = vmul.f32 %v461, 0.6931472
    %v463 = vlog2.pop %v460
    %v464 = vmul.f32 %v463, 0.6931472
    %v465 = vsel %vm457, %v462, -1e+30
    %v466 = vsel %vm458, %v464, -1e+30
    %v467 = vadd.f32 %v451, %v465
    %v468 = vadd.f32 %v454, %v466
    %vm469 = vcmask 7168
    %v470 = vsel %vm469, %v467, -inf
    %v471 = vsel %vm469, %v468, -inf
    %v472 = vmax.f32 %v470, %v471
    %v473 = vrot.slane %v472, 4
    %v474 = vmax.f32 %v472, %v473
    %v475 = vrot.slane %v474, 2
    %v476 = vmax.f32 %v474, %v475
    %v477 = vrot.slane %v476, 1
    %v478 = vmax.f32 %v476, %v477
    %v479 = vsub.f32 %v467, %v478
    %v480 = vsub.f32 %v468, %v478
    %v481 = vmul.f32 %v479, 1.442695
    %v482 = vpow.pop %v481
    %v483 = vmul.f32 %v480, 1.442695
    %v484 = vpow.pop %v483
    %v485 = vsel %vm469, %v482, 0.0
    %v486 = vsel %vm469, %v484, 0.0
    %v487 = vadd.f32 %v485, %v486
    %v488 = vrot.slane %v487, 4
    %v489 = vadd.f32 %v487, %v488
    %v490 = vrot.slane %v489, 2
    %v491 = vadd.f32 %v489, %v490
    %v492 = vrot.slane %v491, 1
    %v493 = vadd.f32 %v491, %v492
    %v494 = vlog2.pop %v493
    %v495 = vmul.f32 %v494, 0.6931472
    %v496 = vsub.f32 0.0, %v495
    %vm497 = vcmp.eq.f32.partialorder %v467, %v478
    %vm498 = vcmp.eq.f32.partialorder %v468, %v478
    %v499 = vlaneseq
    %v500 = vshrl.u32 %v499, 7
    %v501 = vadd.s32 %v500, 8
    %v502 = vcvt.s32.f32 %v500
    %v503 = vcvt.s32.f32 %v501
    %v504 = vsel %vm497, %v502, 16.0
    %v505 = vsel %vm498, %v503, 16.0
    %v506 = vsel %vm469, %v504, inf
    %v507 = vsel %vm469, %v505, inf
    %v508 = vmin.f32 %v506, %v507
    %v509 = vrot.slane %v508, 4
    %v510 = vmin.f32 %v508, %v509
    %v511 = vrot.slane %v510, 2
    %v512 = vmin.f32 %v510, %v511
    %v513 = vrot.slane %v512, 1
    %v514 = vmin.f32 %v512, %v513
    %vm515 = vcmp.eq.f32.partialorder %v502, %v514
    %vm516 = vcmp.eq.f32.partialorder %v503, %v514
    %v517 = vsel %vm515, 1, 0
    %v518 = vsel %vm516, 1, 0
    %v519 = vcvt.s32.f32 %v517
    %v520 = vcvt.s32.f32 %v518
    %521 = vst.msk [vmem:[#allocation3] sm:$0xff] %vm469, %v519
    %522 = vst.msk [vmem:[#allocation3 + $0x8] sm:$0xff] %vm469, %v520
    %v523 = vlaneseq
    %v524 = vand.u32 %v523, 127
    %v525 = vcvt.s32.f32 %v524
    %527 = vset.pattern.permute.xlu0 0
    %528 = vperm.xlu0 %527, %v514
    %v529 = vpop.permute.xlu0 %528
    %vm531 = vcmp.eq.f32.partialorder %v525, %v529
    %v532 = vsel %vm531, 0, 1
    %vm533 = vcmask 122880
    %534 = vst.msk [vmem:[#allocation9] sm:$0x1] %vm533, %v532
    %vm535 = vcmask 0
    %536 = vst.msk [vmem:[#allocation10] sm:$0x1] %vm535, %v496
    // Predicated region
    $region26: #{_rollout_core.1} parent=1 // pred_check
      _
    $region27: #{_rollout_core.1} parent=1 // pred_check_branch
      %538 = sbr.rel (0) target = $region29
    $region28: #{_rollout_core.1} parent=1 // pred_region
      %540 = vsyncadd [#allocation8], 0
      %s542 = sshll.u32 [#allocation9], 4
      %s543 = int_to_ptr.vmem [resolvable:$true] %s542
      %s544 = sshll.u32 %s5, 4
      %s545 = int_to_ptr.hbm [resolvable:$true] %s544
      %547 = dma.vmem_to_hbm [thread:$0]  %s543, 16, %s545, [#allocation8]
    $region29: #{_rollout_core.1} parent=1 // pred_fallthru
      _
    // Predicated region
    $region30: #{_rollout_core.1} parent=1 // pred_check
      _
    $region31: #{_rollout_core.1} parent=1 // pred_check_branch
      %549 = sbr.rel (0) target = $region33
    $region32: #{_rollout_core.1} parent=1 // pred_region
      %551 = vsyncadd [#allocation11], 0
      %s553 = sshll.u32 [#allocation10], 4
      %s554 = int_to_ptr.vmem [resolvable:$true] %s553
      %s555 = sshll.u32 %s6, 4
      %s556 = int_to_ptr.hbm [resolvable:$true] %s555
      %558 = dma.vmem_to_hbm [thread:$0]  %s554, 16, %s556, [#allocation11]
    $region33: #{_rollout_core.1} parent=1 // pred_fallthru
      _
    // Predicated region
    $region34: #{_rollout_core.1} parent=1 // pred_check
      _
    $region35: #{_rollout_core.1} parent=1 // pred_check_branch
      %560 = sbr.rel (0) target = $region37
    $region36: #{_rollout_core.1} parent=1 // pred_region
      %562 = vsyncadd [#allocation11], 0
      %s564 = sshll.u32 [#allocation12], 4
      %s565 = int_to_ptr.vmem [resolvable:$true] %s564
      %s566 = sshll.u32 %s7, 4
      %s567 = int_to_ptr.hbm [resolvable:$true] %s566
      %569 = dma.vmem_to_hbm [thread:$0]  %s565, 16, %s567, [#allocation11]
    $region37: #{_rollout_core.1} parent=1 // pred_fallthru
      _
    // Predicated region
    $region38: #{_rollout_core.1} parent=1 // pred_check
      _
    $region39: #{_rollout_core.1} parent=1 // pred_check_branch
      %571 = sbr.rel (0) target = $region41
    $region40: #{_rollout_core.1} parent=1 // pred_region
      %573 = dma.done [#allocation8], 16
    $region41: #{_rollout_core.1} parent=1 // pred_fallthru
      _
    // Predicated region
    $region42: #{_rollout_core.1} parent=1 // pred_check
      _
    $region43: #{_rollout_core.1} parent=1 // pred_check_branch
      %575 = sbr.rel (0) target = $region45
    $region44: #{_rollout_core.1} parent=1 // pred_region
      %577 = dma.done [#allocation11], 16
    $region45: #{_rollout_core.1} parent=1 // pred_fallthru
      _
    // Predicated region
    $region46: #{_rollout_core.1} parent=1 // pred_check
      _
    $region47: #{_rollout_core.1} parent=1 // pred_check_branch
      %579 = sbr.rel (0) target = $region49
    $region48: #{_rollout_core.1} parent=1 // pred_region
      %581 = dma.done [#allocation11], 16
    $region49: #{_rollout_core.1} parent=1 // pred_fallthru
      _
    %582 = vsyncpa [#allocation7], 1
    %583 = vsyncpa [#allocation8], 1
    %584 = vsyncpa [#allocation11], 1

</llo_original>
